<compile_context>
chip_gen: v7x
topology: tpu7x:2x2x1
jax: 0.10.0
libtpu: 0.0.40
codegen_flags: <defaults>
</compile_context>

<pallas_src>
import functools

import jax
import jax.numpy as jnp
from jax import lax
from jax.experimental import pallas as pl
from jax.experimental.pallas import tpu as pltpu

DEGREE = 4
OUTPUT_DIM = DEGREE ** 2  # 16
INPUT_DIM = 3
_LANE = 128
_SUB = 8
_MIN_TILE = _SUB * _LANE          # 1024 batch elements = one (8,128) group
_TARGET_TILE = 64 * 1024          # preferred batch elements per grid step

# Real spherical-harmonic coefficients (degree 4), identical to the CUDA kernel.
_C0 = 0.28209479177387814
_C1 = 0.48860251190291987
_C2_0 = 1.0925484305920792
_C2_2a = 0.94617469575755997
_C2_2b = 0.31539156525251999
_C2_4 = 0.54627421529603959
_C3_0 = 0.59004358992664352
_C3_1 = 2.8906114426405538
_C3_2 = 0.45704579946446572
_C3_3 = 0.3731763325901154
_C3_5 = 1.4453057213202769


def _sh_kernel(x_ref, o_ref, *, inv_size, chunk_rows):
    # x_ref: (3, TS, 128)  f32  (coordinate, sublane-row, lane) -- batch dense
    # o_ref: (16, TS, 128)      (SH coefficient, sublane-row, lane)
    ts = x_ref.shape[1]
    n_chunks = ts // chunk_rows
    odt = o_ref.dtype

    def chunk(ci, carry):
        # Small sublane chunk keeps only ~11-16 vregs live -> no spill traffic
        # competing with the 16 output stores per (8,128) group.
        r0 = pl.multiple_of(ci * chunk_rows, _SUB)
        rows = pl.ds(r0, chunk_rows)

        x = x_ref[0, rows, :]
        y = x_ref[1, rows, :]
        z = x_ref[2, rows, :]
        if inv_size != 1.0:
            x = x * inv_size
            y = y * inv_size
            z = z * inv_size

        xx = x * x
        yy = y * y
        zz = z * z
        xy = x * y
        yz = y * z
        xz = x * z
        xx_m_yy = xx - yy
        one_m_5zz = 1.0 - 5.0 * zz

        # l = 0
        o_ref[0, rows, :] = jnp.full(x.shape, _C0, dtype=odt)
        # l = 1
        o_ref[1, rows, :] = (-_C1 * y).astype(odt)
        o_ref[2, rows, :] = (_C1 * z).astype(odt)
        o_ref[3, rows, :] = (-_C1 * x).astype(odt)
        # l = 2
        o_ref[4, rows, :] = (_C2_0 * xy).astype(odt)
        o_ref[5, rows, :] = (-_C2_0 * yz).astype(odt)
        o_ref[6, rows, :] = (_C2_2a * zz - _C2_2b).astype(odt)
        o_ref[7, rows, :] = (-_C2_0 * xz).astype(odt)
        o_ref[8, rows, :] = (_C2_4 * xx_m_yy).astype(odt)
        # l = 3
        o_ref[9, rows, :] = (_C3_0 * y * (-3.0 * xx + yy)).astype(odt)
        o_ref[10, rows, :] = (_C3_1 * xy * z).astype(odt)
        o_ref[11, rows, :] = (_C3_2 * y * one_m_5zz).astype(odt)
        o_ref[12, rows, :] = (_C3_3 * z * (5.0 * zz - 3.0)).astype(odt)
        o_ref[13, rows, :] = (_C3_2 * x * one_m_5zz).astype(odt)
        o_ref[14, rows, :] = (_C3_5 * z * xx_m_yy).astype(odt)
        o_ref[15, rows, :] = (_C3_0 * x * (-xx + 3.0 * yy)).astype(odt)
        return carry

    lax.fori_loop(0, n_chunks, chunk, 0)


def _round_up(v, m):
    return ((v + m - 1) // m) * m


def _choose_tiling(batch):
    """Fixed-large-tile scheme: pad the batch to a tile multiple.

    Returns (tile, padded_batch, n_grid_steps) with tile a multiple of 1024,
    tile <= ~64K elements, and >= 2 grid steps whenever the batch allows it
    (so v7x's two TensorCores both get work via the "parallel" grid axis).
    """
    bp0 = max(_MIN_TILE, _round_up(batch, _MIN_TILE))
    n_steps = max(1, (bp0 + _TARGET_TILE - 1) // _TARGET_TILE)
    if bp0 >= 2 * _MIN_TILE:
        n_steps = max(n_steps, 2)
    tile = _round_up((bp0 + n_steps - 1) // n_steps, _MIN_TILE)
    return tile, tile * n_steps, n_steps


def sh_encoder_forward(inputs, size=1.0, degree=DEGREE, *,
                       out_dtype=jnp.float32, transpose_output=True):
    """JAX/Pallas equivalent of SHEncoder(input_dim=3, degree=4).forward.

    transpose_output=False returns the coefficient-major layout
    (16, *prefix_shape) and skips the final XLA relayout (use when the
    consumer can contract over the batch axis directly).
    """
    assert degree == DEGREE, "this Pallas kernel implements degree == 4"
    assert inputs.shape[-1] == INPUT_DIM
    prefix_shape = inputs.shape[:-1]
    # NOTE: `size` is baked into the kernel; distinct sizes retrace (size is a
    # compile-time constant in practice for this module).
    inv_size = 1.0 / float(size)

    x2 = inputs.reshape(-1, INPUT_DIM).astype(jnp.float32)
    b = x2.shape[0]
    tile, bp, n_steps = _choose_tiling(b)

    # Pad first, then one transpose to SoA (3, Bp); reshape to (3, Bp//128, 128)
    # is a free row-major view.
    if bp != b:
        x2 = jnp.pad(x2, ((0, bp - b), (0, 0)))
    x3 = x2.T.reshape(INPUT_DIM, bp // _LANE, _LANE)

    ts = tile // _LANE                      # multiple of 8
    chunk_rows = _SUB
    if jnp.dtype(out_dtype).itemsize < 4 and ts % (2 * _SUB) == 0:
        chunk_rows = 2 * _SUB               # full packed tiles for 16-bit out

    out3 = pl.pallas_call(
        functools.partial(_sh_kernel, inv_size=inv_size, chunk_rows=chunk_rows),
        out_shape=jax.ShapeDtypeStruct((OUTPUT_DIM, bp // _LANE, _LANE),
                                       out_dtype),
        grid=(n_steps,),
        in_specs=[pl.BlockSpec((INPUT_DIM, ts, _LANE), lambda i: (0, i, 0))],
        out_specs=pl.BlockSpec((OUTPUT_DIM, ts, _LANE), lambda i: (0, i, 0)),
        compiler_params=pltpu.CompilerParams(
            dimension_semantics=("parallel",),
            vmem_limit_bytes=32 * 1024 * 1024),
    )(x3)

    out = out3.reshape(OUTPUT_DIM, bp)
    if transpose_output:
        return out.T[:b].reshape(prefix_shape + (OUTPUT_DIM,))
    return out[:, :b].reshape((OUTPUT_DIM,) + tuple(prefix_shape))


def _sh_reference(inputs, size=1.0):
    """Pure-JAX reference (same coefficients) for correctness checking."""
    v = (inputs / size).astype(jnp.float32)
    x, y, z = v[..., 0], v[..., 1], v[..., 2]
    xx, yy, zz = x * x, y * y, z * z
    xy, yz, xz = x * y, y * z, x * z
    outs = [
        jnp.full_like(x, _C0),
        -_C1 * y,
        _C1 * z,
        -_C1 * x,
        _C2_0 * xy,
        -_C2_0 * yz,
        _C2_2a * zz - _C2_2b,
        -_C2_0 * xz,
        _C2_4 * xx - _C2_4 * yy,
        _C3_0 * y * (-3.0 * xx + yy),
        _C3_1 * xy * z,
        _C3_2 * y * (1.0 - 5.0 * zz),
        _C3_3 * z * (5.0 * zz - 3.0),
        _C3_2 * x * (1.0 - 5.0 * zz),
        _C3_5 * z * (xx - yy),
        _C3_0 * x * (-xx + 3.0 * yy),
    ]
    return jnp.stack(outs, axis=-1)


if __name__ == "__main__":
    key = jax.random.PRNGKey(0)
    # Small shapes consistent with the module: view directions of shape (2, 64, 3).
    dirs = jax.random.normal(key, (2, 64, 3), dtype=jnp.float32)
    dirs = dirs / jnp.linalg.norm(dirs, axis=-1, keepdims=True)

    out = jax.block_until_ready(sh_encoder_forward(dirs, size=1.0, degree=4))
    ref = _sh_reference(dirs, size=1.0)
    assert out.shape == (2, 64, 16), out.shape
    assert jnp.allclose(out, ref, atol=1e-5, rtol=1e-5), "mismatch vs reference"

    # Exercise the in-kernel size-scale path as well.
    out2 = jax.block_until_ready(sh_encoder_forward(dirs, size=2.0, degree=4))
    ref2 = _sh_reference(dirs, size=2.0)
    assert jnp.allclose(out2, ref2, atol=1e-5, rtol=1e-5), "mismatch (size=2)"

    print("KERNEL_OK")
</pallas_src>

<mosaic_0001>
module attributes {stable_mosaic.version = 11 : i64} {
  func.func @_sh_kernel(%arg0: i32, %arg1: memref<3x8x128xf32, #tpu.memory_space<vmem>>, %arg2: memref<16x8x128xf32, #tpu.memory_space<vmem>>) attributes {dimension_semantics = [#tpu.dimension_semantics<parallel>], iteration_bounds = array<i64: 1>, scalar_prefetch = 0 : i64, scratch_operands = 0 : i64, tpu.core_type = #tpu.core_type<tc>, window_params = [{transform_indices = @transform_0, window_bounds = array<i64: 3, 8, 128>}, {transform_indices = @transform_1, window_bounds = array<i64: 16, 8, 128>}]} {
    %c0_i32 = arith.constant 0 : i32
    %c8_i32 = arith.constant 8 : i32
    %0 = arith.muli %c0_i32, %c8_i32 : i32
    %1 = tpu.assume_multiple %0, 8 : i32
    %c0 = arith.constant 0 : index
    %2 = arith.index_cast %1 : i32 to index
    %c0_0 = arith.constant 0 : index
    %3 = vector.load %arg1[%c0, %2, %c0_0] : memref<3x8x128xf32, #tpu.memory_space<vmem>>, vector<1x8x128xf32>
    %4 = vector.shape_cast %3 : vector<1x8x128xf32> to vector<8x128xf32>
    %c1 = arith.constant 1 : index
    %5 = arith.index_cast %1 : i32 to index
    %c0_1 = arith.constant 0 : index
    %6 = vector.load %arg1[%c1, %5, %c0_1] : memref<3x8x128xf32, #tpu.memory_space<vmem>>, vector<1x8x128xf32>
    %7 = vector.shape_cast %6 : vector<1x8x128xf32> to vector<8x128xf32>
    %c2 = arith.constant 2 : index
    %8 = arith.index_cast %1 : i32 to index
    %c0_2 = arith.constant 0 : index
    %9 = vector.load %arg1[%c2, %8, %c0_2] : memref<3x8x128xf32, #tpu.memory_space<vmem>>, vector<1x8x128xf32>
    %10 = vector.shape_cast %9 : vector<1x8x128xf32> to vector<8x128xf32>
    %11 = arith.mulf %4, %4 : vector<8x128xf32>
    %12 = arith.mulf %7, %7 : vector<8x128xf32>
    %13 = arith.mulf %10, %10 : vector<8x128xf32>
    %14 = arith.mulf %4, %7 : vector<8x128xf32>
    %15 = arith.mulf %7, %10 : vector<8x128xf32>
    %16 = arith.mulf %4, %10 : vector<8x128xf32>
    %17 = arith.subf %11, %12 : vector<8x128xf32>
    %cst = arith.constant 5.000000e+00 : f32
    %18 = vector.broadcast %cst : f32 to vector<8x128xf32>
    %19 = arith.mulf %18, %13 : vector<8x128xf32>
    %cst_3 = arith.constant 1.000000e+00 : f32
    %20 = vector.broadcast %cst_3 : f32 to vector<8x128xf32>
    %21 = arith.subf %20, %19 : vector<8x128xf32>
    %cst_4 = arith.constant 0.282094806 : f32
    %22 = vector.broadcast %cst_4 : f32 to vector<8x128xf32>
    %c0_5 = arith.constant 0 : index
    %23 = arith.index_cast %1 : i32 to index
    %c0_6 = arith.constant 0 : index
    %24 = vector.load %arg2[%c0_5, %23, %c0_6] : memref<16x8x128xf32, #tpu.memory_space<vmem>>, vector<1x8x128xf32>
    %25 = vector.shape_cast %24 : vector<1x8x128xf32> to vector<8x128xf32>
    %26 = vector.shape_cast %22 : vector<8x128xf32> to vector<1x8x128xf32>
    tpu.vector_store %arg2[%c0_5, %23, %c0_6], %26 {strides = array<i32>} : memref<16x8x128xf32, #tpu.memory_space<vmem>>, vector<1x8x128xf32>,
    %cst_7 = arith.constant -0.488602519 : f32
    %27 = vector.broadcast %cst_7 : f32 to vector<8x128xf32>
    %28 = arith.mulf %27, %7 : vector<8x128xf32>
    %c1_8 = arith.constant 1 : index
    %29 = arith.index_cast %1 : i32 to index
    %c0_9 = arith.constant 0 : index
    %30 = vector.load %arg2[%c1_8, %29, %c0_9] : memref<16x8x128xf32, #tpu.memory_space<vmem>>, vector<1x8x128xf32>
    %31 = vector.shape_cast %30 : vector<1x8x128xf32> to vector<8x128xf32>
    %32 = vector.shape_cast %28 : vector<8x128xf32> to vector<1x8x128xf32>
    tpu.vector_store %arg2[%c1_8, %29, %c0_9], %32 {strides = array<i32>} : memref<16x8x128xf32, #tpu.memory_space<vmem>>, vector<1x8x128xf32>,
    %cst_10 = arith.constant 0.488602519 : f32
    %33 = vector.broadcast %cst_10 : f32 to vector<8x128xf32>
    %34 = arith.mulf %33, %10 : vector<8x128xf32>
    %c2_11 = arith.constant 2 : index
    %35 = arith.index_cast %1 : i32 to index
    %c0_12 = arith.constant 0 : index
    %36 = vector.load %arg2[%c2_11, %35, %c0_12] : memref<16x8x128xf32, #tpu.memory_space<vmem>>, vector<1x8x128xf32>
    %37 = vector.shape_cast %36 : vector<1x8x128xf32> to vector<8x128xf32>
    %38 = vector.shape_cast %34 : vector<8x128xf32> to vector<1x8x128xf32>
    tpu.vector_store %arg2[%c2_11, %35, %c0_12], %38 {strides = array<i32>} : memref<16x8x128xf32, #tpu.memory_space<vmem>>, vector<1x8x128xf32>,
    %cst_13 = arith.constant -0.488602519 : f32
    %39 = vector.broadcast %cst_13 : f32 to vector<8x128xf32>
    %40 = arith.mulf %39, %4 : vector<8x128xf32>
    %c3 = arith.constant 3 : index
    %41 = arith.index_cast %1 : i32 to index
    %c0_14 = arith.constant 0 : index
    %42 = vector.load %arg2[%c3, %41, %c0_14] : memref<16x8x128xf32, #tpu.memory_space<vmem>>, vector<1x8x128xf32>
    %43 = vector.shape_cast %42 : vector<1x8x128xf32> to vector<8x128xf32>
    %44 = vector.shape_cast %40 : vector<8x128xf32> to vector<1x8x128xf32>
    tpu.vector_store %arg2[%c3, %41, %c0_14], %44 {strides = array<i32>} : memref<16x8x128xf32, #tpu.memory_space<vmem>>, vector<1x8x128xf32>,
    %cst_15 = arith.constant 1.09254849 : f32
    %45 = vector.broadcast %cst_15 : f32 to vector<8x128xf32>
    %46 = arith.mulf %45, %14 : vector<8x128xf32>
    %c4 = arith.constant 4 : index
    %47 = arith.index_cast %1 : i32 to index
    %c0_16 = arith.constant 0 : index
    %48 = vector.load %arg2[%c4, %47, %c0_16] : memref<16x8x128xf32, #tpu.memory_space<vmem>>, vector<1x8x128xf32>
    %49 = vector.shape_cast %48 : vector<1x8x128xf32> to vector<8x128xf32>
    %50 = vector.shape_cast %46 : vector<8x128xf32> to vector<1x8x128xf32>
    tpu.vector_store %arg2[%c4, %47, %c0_16], %50 {strides = array<i32>} : memref<16x8x128xf32, #tpu.memory_space<vmem>>, vector<1x8x128xf32>,
    %cst_17 = arith.constant -1.09254849 : f32
    %51 = vector.broadcast %cst_17 : f32 to vector<8x128xf32>
    %52 = arith.mulf %51, %15 : vector<8x128xf32>
    %c5 = arith.constant 5 : index
    %53 = arith.index_cast %1 : i32 to index
    %c0_18 = arith.constant 0 : index
    %54 = vector.load %arg2[%c5, %53, %c0_18] : memref<16x8x128xf32, #tpu.memory_space<vmem>>, vector<1x8x128xf32>
    %55 = vector.shape_cast %54 : vector<1x8x128xf32> to vector<8x128xf32>
    %56 = vector.shape_cast %52 : vector<8x128xf32> to vector<1x8x128xf32>
    tpu.vector_store %arg2[%c5, %53, %c0_18], %56 {strides = array<i32>} : memref<16x8x128xf32, #tpu.memory_space<vmem>>, vector<1x8x128xf32>,
    %cst_19 = arith.constant 0.946174681 : f32
    %57 = vector.broadcast %cst_19 : f32 to vector<8x128xf32>
    %58 = arith.mulf %57, %13 : vector<8x128xf32>
    %cst_20 = arith.constant 0.31539157 : f32
    %59 = vector.broadcast %cst_20 : f32 to vector<8x128xf32>
    %60 = arith.subf %58, %59 : vector<8x128xf32>
    %c6 = arith.constant 6 : index
    %61 = arith.index_cast %1 : i32 to index
    %c0_21 = arith.constant 0 : index
    %62 = vector.load %arg2[%c6, %61, %c0_21] : memref<16x8x128xf32, #tpu.memory_space<vmem>>, vector<1x8x128xf32>
    %63 = vector.shape_cast %62 : vector<1x8x128xf32> to vector<8x128xf32>
    %64 = vector.shape_cast %60 : vector<8x128xf32> to vector<1x8x128xf32>
    tpu.vector_store %arg2[%c6, %61, %c0_21], %64 {strides = array<i32>} : memref<16x8x128xf32, #tpu.memory_space<vmem>>, vector<1x8x128xf32>,
    %cst_22 = arith.constant -1.09254849 : f32
    %65 = vector.broadcast %cst_22 : f32 to vector<8x128xf32>
    %66 = arith.mulf %65, %16 : vector<8x128xf32>
    %c7 = arith.constant 7 : index
    %67 = arith.index_cast %1 : i32 to index
    %c0_23 = arith.constant 0 : index
    %68 = vector.load %arg2[%c7, %67, %c0_23] : memref<16x8x128xf32, #tpu.memory_space<vmem>>, vector<1x8x128xf32>
    %69 = vector.shape_cast %68 : vector<1x8x128xf32> to vector<8x128xf32>
    %70 = vector.shape_cast %66 : vector<8x128xf32> to vector<1x8x128xf32>
    tpu.vector_store %arg2[%c7, %67, %c0_23], %70 {strides = array<i32>} : memref<16x8x128xf32, #tpu.memory_space<vmem>>, vector<1x8x128xf32>,
    %cst_24 = arith.constant 0.546274245 : f32
    %71 = vector.broadcast %cst_24 : f32 to vector<8x128xf32>
    %72 = arith.mulf %71, %17 : vector<8x128xf32>
    %c8 = arith.constant 8 : index
    %73 = arith.index_cast %1 : i32 to index
    %c0_25 = arith.constant 0 : index
    %74 = vector.load %arg2[%c8, %73, %c0_25] : memref<16x8x128xf32, #tpu.memory_space<vmem>>, vector<1x8x128xf32>
    %75 = vector.shape_cast %74 : vector<1x8x128xf32> to vector<8x128xf32>
    %76 = vector.shape_cast %72 : vector<8x128xf32> to vector<1x8x128xf32>
    tpu.vector_store %arg2[%c8, %73, %c0_25], %76 {strides = array<i32>} : memref<16x8x128xf32, #tpu.memory_space<vmem>>, vector<1x8x128xf32>,
    %cst_26 = arith.constant 0.590043604 : f32
    %77 = vector.broadcast %cst_26 : f32 to vector<8x128xf32>
    %78 = arith.mulf %77, %7 : vector<8x128xf32>
    %cst_27 = arith.constant -3.000000e+00 : f32
    %79 = vector.broadcast %cst_27 : f32 to vector<8x128xf32>
    %80 = arith.mulf %79, %11 : vector<8x128xf32>
    %81 = arith.addf %80, %12 : vector<8x128xf32>
    %82 = arith.mulf %78, %81 : vector<8x128xf32>
    %c9 = arith.constant 9 : index
    %83 = arith.index_cast %1 : i32 to index
    %c0_28 = arith.constant 0 : index
    %84 = vector.load %arg2[%c9, %83, %c0_28] : memref<16x8x128xf32, #tpu.memory_space<vmem>>, vector<1x8x128xf32>
    %85 = vector.shape_cast %84 : vector<1x8x128xf32> to vector<8x128xf32>
    %86 = vector.shape_cast %82 : vector<8x128xf32> to vector<1x8x128xf32>
    tpu.vector_store %arg2[%c9, %83, %c0_28], %86 {strides = array<i32>} : memref<16x8x128xf32, #tpu.memory_space<vmem>>, vector<1x8x128xf32>,
    %cst_29 = arith.constant 2.89061141 : f32
    %87 = vector.broadcast %cst_29 : f32 to vector<8x128xf32>
    %88 = arith.mulf %87, %14 : vector<8x128xf32>
    %89 = arith.mulf %88, %10 : vector<8x128xf32>
    %c10 = arith.constant 10 : index
    %90 = arith.index_cast %1 : i32 to index
    %c0_30 = arith.constant 0 : index
    %91 = vector.load %arg2[%c10, %90, %c0_30] : memref<16x8x128xf32, #tpu.memory_space<vmem>>, vector<1x8x128xf32>
    %92 = vector.shape_cast %91 : vector<1x8x128xf32> to vector<8x128xf32>
    %93 = vector.shape_cast %89 : vector<8x128xf32> to vector<1x8x128xf32>
    tpu.vector_store %arg2[%c10, %90, %c0_30], %93 {strides = array<i32>} : memref<16x8x128xf32, #tpu.memory_space<vmem>>, vector<1x8x128xf32>,
    %cst_31 = arith.constant 0.457045794 : f32
    %94 = vector.broadcast %cst_31 : f32 to vector<8x128xf32>
    %95 = arith.mulf %94, %7 : vector<8x128xf32>
    %96 = arith.mulf %95, %21 : vector<8x128xf32>
    %c11 = arith.constant 11 : index
    %97 = arith.index_cast %1 : i32 to index
    %c0_32 = arith.constant 0 : index
    %98 = vector.load %arg2[%c11, %97, %c0_32] : memref<16x8x128xf32, #tpu.memory_space<vmem>>, vector<1x8x128xf32>
    %99 = vector.shape_cast %98 : vector<1x8x128xf32> to vector<8x128xf32>
    %100 = vector.shape_cast %96 : vector<8x128xf32> to vector<1x8x128xf32>
    tpu.vector_store %arg2[%c11, %97, %c0_32], %100 {strides = array<i32>} : memref<16x8x128xf32, #tpu.memory_space<vmem>>, vector<1x8x128xf32>,
    %cst_33 = arith.constant 0.373176336 : f32
    %101 = vector.broadcast %cst_33 : f32 to vector<8x128xf32>
    %102 = arith.mulf %101, %10 : vector<8x128xf32>
    %cst_34 = arith.constant 5.000000e+00 : f32
    %103 = vector.broadcast %cst_34 : f32 to vector<8x128xf32>
    %104 = arith.mulf %103, %13 : vector<8x128xf32>
    %cst_35 = arith.constant 3.000000e+00 : f32
    %105 = vector.broadcast %cst_35 : f32 to vector<8x128xf32>
    %106 = arith.subf %104, %105 : vector<8x128xf32>
    %107 = arith.mulf %102, %106 : vector<8x128xf32>
    %c12 = arith.constant 12 : index
    %108 = arith.index_cast %1 : i32 to index
    %c0_36 = arith.constant 0 : index
    %109 = vector.load %arg2[%c12, %108, %c0_36] : memref<16x8x128xf32, #tpu.memory_space<vmem>>, vector<1x8x128xf32>
    %110 = vector.shape_cast %109 : vector<1x8x128xf32> to vector<8x128xf32>
    %111 = vector.shape_cast %107 : vector<8x128xf32> to vector<1x8x128xf32>
    tpu.vector_store %arg2[%c12, %108, %c0_36], %111 {strides = array<i32>} : memref<16x8x128xf32, #tpu.memory_space<vmem>>, vector<1x8x128xf32>,
    %cst_37 = arith.constant 0.457045794 : f32
    %112 = vector.broadcast %cst_37 : f32 to vector<8x128xf32>
    %113 = arith.mulf %112, %4 : vector<8x128xf32>
    %114 = arith.mulf %113, %21 : vector<8x128xf32>
    %c13 = arith.constant 13 : index
    %115 = arith.index_cast %1 : i32 to index
    %c0_38 = arith.constant 0 : index
    %116 = vector.load %arg2[%c13, %115, %c0_38] : memref<16x8x128xf32, #tpu.memory_space<vmem>>, vector<1x8x128xf32>
    %117 = vector.shape_cast %116 : vector<1x8x128xf32> to vector<8x128xf32>
    %118 = vector.shape_cast %114 : vector<8x128xf32> to vector<1x8x128xf32>
    tpu.vector_store %arg2[%c13, %115, %c0_38], %118 {strides = array<i32>} : memref<16x8x128xf32, #tpu.memory_space<vmem>>, vector<1x8x128xf32>,
    %cst_39 = arith.constant 1.44530571 : f32
    %119 = vector.broadcast %cst_39 : f32 to vector<8x128xf32>
    %120 = arith.mulf %119, %10 : vector<8x128xf32>
    %121 = arith.mulf %120, %17 : vector<8x128xf32>
    %c14 = arith.constant 14 : index
    %122 = arith.index_cast %1 : i32 to index
    %c0_40 = arith.constant 0 : index
    %123 = vector.load %arg2[%c14, %122, %c0_40] : memref<16x8x128xf32, #tpu.memory_space<vmem>>, vector<1x8x128xf32>
    %124 = vector.shape_cast %123 : vector<1x8x128xf32> to vector<8x128xf32>
    %125 = vector.shape_cast %121 : vector<8x128xf32> to vector<1x8x128xf32>
    tpu.vector_store %arg2[%c14, %122, %c0_40], %125 {strides = array<i32>} : memref<16x8x128xf32, #tpu.memory_space<vmem>>, vector<1x8x128xf32>,
    %cst_41 = arith.constant 0.590043604 : f32
    %126 = vector.broadcast %cst_41 : f32 to vector<8x128xf32>
    %127 = arith.mulf %126, %4 : vector<8x128xf32>
    %cst_42 = arith.constant 0.000000e+00 : f32
    %128 = vector.broadcast %cst_42 : f32 to vector<8x128xf32>
    %129 = arith.subf %128, %11 : vector<8x128xf32>
    %cst_43 = arith.constant 3.000000e+00 : f32
    %130 = vector.broadcast %cst_43 : f32 to vector<8x128xf32>
    %131 = arith.mulf %130, %12 : vector<8x128xf32>
    %132 = arith.addf %129, %131 : vector<8x128xf32>
    %133 = arith.mulf %127, %132 : vector<8x128xf32>
    %c15 = arith.constant 15 : index
    %134 = arith.index_cast %1 : i32 to index
    %c0_44 = arith.constant 0 : index
    %135 = vector.load %arg2[%c15, %134, %c0_44] : memref<16x8x128xf32, #tpu.memory_space<vmem>>, vector<1x8x128xf32>
    %136 = vector.shape_cast %135 : vector<1x8x128xf32> to vector<8x128xf32>
    %137 = vector.shape_cast %133 : vector<8x128xf32> to vector<1x8x128xf32>
    tpu.vector_store %arg2[%c15, %134, %c0_44], %137 {strides = array<i32>} : memref<16x8x128xf32, #tpu.memory_space<vmem>>, vector<1x8x128xf32>,
    %c1_i32 = arith.constant 1 : i32
    return
  }
  func.func @transform_0(%arg0: i32) -> (i32, i32, i32) {
    %c0_i32 = arith.constant 0 : i32
    %c0_i32_0 = arith.constant 0 : i32
    %c0_i32_1 = arith.constant 0 : i32
    return %c0_i32, %arg0, %c0_i32_0 : i32, i32, i32
  }
  func.func @transform_1(%arg0: i32) -> (i32, i32, i32) {
    %c0_i32 = arith.constant 0 : i32
    %c0_i32_0 = arith.constant 0 : i32
    %c0_i32_1 = arith.constant 0 : i32
    return %c0_i32, %arg0, %c0_i32_0 : i32, i32, i32
  }
}

</mosaic_0001>

<llo_original>
// kernel: tpu_custom_call.1
$region0: #{tpu_custom_call.1}
  #allocation0 [shape = 'u32[]', space=smem, size = 0x4, offset = 0x4, fixed_abs, tag = 'smem constant byte address 0x4 - core index']
  #allocation1 [shape = 'u32[144,128]{1,0:T(1,128)}', space=vmem, size = 0x12000, scoped, tag = 'internal scratch']
  %s0 = inlined_call_operand.hbm [shape: f32[3,8,128], index: 0, kind: input, shape index: {}]
  %s1 = inlined_call_operand.hbm [shape: f32[16,8,128], index: 1, kind: output, shape index: {}]
  %s2 = sld [smem:[#allocation0]]
  $region18: #{tpu_custom_call.1} parent=0
    _
  %s4 = ssub.s32 1, %s2
  %s5 = scalar_select 0, %s4, %s2
  $region1: #{tpu_custom_call.1} parent=0
    #allocation2 [shape = 'u8[12288]{0}', space=vmem, size = 0x3000, scoped, tag = 'input window, operand 0, single buffered']
    #allocation3 [shape = 's32[1]{0}', space=sflag, size = 0x4, scoped, tag = 'scoped memory for tpu_custom_call.1']
    #allocation4 [shape = 's32[1]{0}', space=sflag, size = 0x4, scoped, tag = 'scoped memory for tpu_custom_call.1']
    #allocation5 [shape = 'u8[65536]{0}', space=vmem, size = 0x10000, scoped, tag = 'output window, operand 0, single buffered']
    %6 = vsyncpa [#allocation3], 0
    %7 = vsyncpa [#allocation4], 0
    // Predicated region
    $region2: #{tpu_custom_call.1} parent=1 // pred_check
      _
    $region3: #{tpu_custom_call.1} parent=1 // pred_check_branch
      %9 = sbr.rel (0) target = $region5
    $region4: #{tpu_custom_call.1} parent=1 // pred_region
      %s11 = ssub.s32 384, 384
      %12 = vsyncadd [#allocation3], %s11
      %s13 = sshll.u32 [#allocation2], 4
      %s14 = int_to_ptr.vmem [resolvable:$true] %s13
      %19 = dma.hbm_to_vmem [thread:$0]  %s0, 384, %s14, [#allocation3], 128, 128, 8
    $region5: #{tpu_custom_call.1} parent=1 // pred_fallthru
      _
    // Predicated region
    $region6: #{tpu_custom_call.1} parent=1 // pred_check
      _
    $region7: #{tpu_custom_call.1} parent=1 // pred_check_branch
      %21 = sbr.rel (0) target = $region9
    $region8: #{tpu_custom_call.1} parent=1 // pred_region
      %22 = dma.done [#allocation3], 384
    $region9: #{tpu_custom_call.1} parent=1 // pred_fallthru
      _
    %v23 = vld [vmem:[#allocation2] sm:$0xff]
    %s24 = sadd.s32 0, 8
    %s25 = scalar_lea.vmem [#allocation2], %s24
    %v26 = vld [vmem:[%s25] sm:$0xff]
    %s27 = sadd.s32 0, 16
    %s28 = scalar_lea.vmem [#allocation2], %s27
    %v29 = vld [vmem:[%s28] sm:$0xff]
    %v30 = vmul.f32 %v23, %v23
    %v31 = vmul.f32 %v26, %v26
    %v32 = vmul.f32 %v29, %v29
    %v33 = vmul.f32 %v23, %v26
    %v34 = vmul.f32 %v26, %v29
    %v35 = vmul.f32 %v23, %v29
    %v36 = vsub.f32 %v30, %v31
    %v37 = vmul.f32 %v32, 5.0
    %v38 = vsub.f32 1.0, %v37
    %39 = vst [vmem:[#allocation5] sm:$0xff] 0.2820948
    %v40 = vmul.f32 %v26, -0.48860252
    %s41 = scalar_lea.vmem [#allocation5], %s24
    %42 = vst [vmem:[%s41] sm:$0xff] %v40
    %v43 = vmul.f32 %v29, 0.48860252
    %s44 = scalar_lea.vmem [#allocation5], %s27
    %45 = vst [vmem:[%s44] sm:$0xff] %v43
    %v46 = vmul.f32 %v23, -0.48860252
    %s47 = sadd.s32 0, 24
    %s48 = scalar_lea.vmem [#allocation5], %s47
    %49 = vst [vmem:[%s48] sm:$0xff] %v46
    %v50 = vmul.f32 %v33, 1.0925485
    %s51 = sadd.s32 0, 32
    %s52 = scalar_lea.vmem [#allocation5], %s51
    %53 = vst [vmem:[%s52] sm:$0xff] %v50
    %v54 = vmul.f32 %v34, -1.0925485
    %s55 = sadd.s32 0, 40
    %s56 = scalar_lea.vmem [#allocation5], %s55
    %57 = vst [vmem:[%s56] sm:$0xff] %v54
    %v58 = vmul.f32 %v32, 0.9461747
    %v59 = vsub.f32 %v58, 0.31539157
    %s60 = sadd.s32 0, 48
    %s61 = scalar_lea.vmem [#allocation5], %s60
    %62 = vst [vmem:[%s61] sm:$0xff] %v59
    %v63 = vmul.f32 %v35, -1.0925485
    %s64 = sadd.s32 0, 56
    %s65 = scalar_lea.vmem [#allocation5], %s64
    %66 = vst [vmem:[%s65] sm:$0xff] %v63
    %v67 = vmul.f32 %v36, 0.54627424
    %s68 = sadd.s32 0, 64
    %s69 = scalar_lea.vmem [#allocation5], %s68
    %70 = vst [vmem:[%s69] sm:$0xff] %v67
    %v71 = vmul.f32 %v26, 0.5900436
    %v72 = vmul.f32 %v30, -3.0
    %v73 = vadd.f32 %v72, %v31
    %v74 = vmul.f32 %v71, %v73
    %s75 = sadd.s32 0, 72
    %s76 = scalar_lea.vmem [#allocation5], %s75
    %77 = vst [vmem:[%s76] sm:$0xff] %v74
    %v78 = vmul.f32 %v33, 2.8906114
    %v79 = vmul.f32 %v78, %v29
    %s80 = sadd.s32 0, 80
    %s81 = scalar_lea.vmem [#allocation5], %s80
    %82 = vst [vmem:[%s81] sm:$0xff] %v79
    %v83 = vmul.f32 %v26, 0.4570458
    %v84 = vmul.f32 %v83, %v38
    %s85 = sadd.s32 0, 88
    %s86 = scalar_lea.vmem [#allocation5], %s85
    %87 = vst [vmem:[%s86] sm:$0xff] %v84
    %v88 = vmul.f32 %v29, 0.37317634
    %v89 = vsub.f32 %v37, 3.0
    %v90 = vmul.f32 %v88, %v89
    %s91 = sadd.s32 0, 96
    %s92 = scalar_lea.vmem [#allocation5], %s91
    %93 = vst [vmem:[%s92] sm:$0xff] %v90
    %v94 = vmul.f32 %v23, 0.4570458
    %v95 = vmul.f32 %v94, %v38
    %s96 = sadd.s32 0, 104
    %s97 = scalar_lea.vmem [#allocation5], %s96
    %98 = vst [vmem:[%s97] sm:$0xff] %v95
    %v99 = vmul.f32 %v29, 1.4453057
    %v100 = vmul.f32 %v99, %v36
    %s101 = sadd.s32 0, 112
    %s102 = scalar_lea.vmem [#allocation5], %s101
    %103 = vst [vmem:[%s102] sm:$0xff] %v100
    %v104 = vmul.f32 %v23, 0.5900436
    %v105 = vsub.f32 0.0, %v30
    %v106 = vmul.f32 %v31, 3.0
    %v107 = vadd.f32 %v105, %v106
    %v108 = vmul.f32 %v104, %v107
    %s109 = sadd.s32 0, 120
    %s110 = scalar_lea.vmem [#allocation5], %s109
    %111 = vst [vmem:[%s110] sm:$0xff] %v108
    // Predicated region
    $region10: #{tpu_custom_call.1} parent=1 // pred_check
      _
    $region11: #{tpu_custom_call.1} parent=1 // pred_check_branch
      %113 = sbr.rel (0) target = $region13
    $region12: #{tpu_custom_call.1} parent=1 // pred_region
      %s115 = ssub.s32 2048, 2048
      %116 = vsyncadd [#allocation4], %s115
      %s117 = sshll.u32 [#allocation5], 4
      %s118 = int_to_ptr.vmem [resolvable:$true] %s117
      %123 = dma.vmem_to_hbm [thread:$0]  %s118, 2048, %s1, [#allocation4], 128, 128, 8
    $region13: #{tpu_custom_call.1} parent=1 // pred_fallthru
      _
    // Predicated region
    $region14: #{tpu_custom_call.1} parent=1 // pred_check
      _
    $region15: #{tpu_custom_call.1} parent=1 // pred_check_branch
      %125 = sbr.rel (0) target = $region17
    $region16: #{tpu_custom_call.1} parent=1 // pred_region
      %126 = dma.done [#allocation4], 2048
    $region17: #{tpu_custom_call.1} parent=1 // pred_fallthru
      _
    %127 = vsyncpa [#allocation3], 1
    %128 = vsyncpa [#allocation4], 1

</llo_original>
